<compile_context>
chip_gen: v5e
topology: v5e:2x2
jax: 0.10.0
libtpu: 0.0.40
codegen_flags: <defaults>
</compile_context>

<pallas_src>
import jax
import jax.numpy as jnp
from jax import lax
from jax.experimental import pallas as pl
from jax.experimental.pallas import tpu as pltpu

BN_EPS = 1e-5


def residual_connection_kernel(x_ref, w_ref, p_ref, o_ref):
    # x_ref / o_ref: (Gb, C, N*L)  Gb independent problems, lane-dense slabs
    # w_ref:         (C, C)        sublayer pointwise weight (resident)
    # p_ref:         (3, C, 1)     packed [sublayer bias, bn gamma, bn beta] (resident)
    gb, _, nl = x_ref.shape

    w = w_ref[...]
    p = p_ref[...]
    b, gamma, beta = p[0], p[1], p[2]                       # each (C, 1)
    inv_count = 1.0 / float(nl)                             # count = N * L per problem

    def body(g, carry):
        # --- sublayer(x): one (C,C) x (C, N*L) MXU contraction -------------
        x = x_ref[g]                                        # (C, N*L)
        y = jnp.dot(w, x, preferred_element_type=jnp.float32) + b

        # --- dropout: identity (train mode, p = 0.0) ------------------------

        # --- BatchNorm1d, training-mode batch stats, single pass ------------
        s = y.sum(axis=1, keepdims=True)                    # (C, 1)
        ss = (y * y).sum(axis=1, keepdims=True)             # (C, 1)
        mean = s * inv_count
        var = jnp.maximum(ss * inv_count - mean * mean, 0.0)  # clamp cancellation
        scale = gamma * lax.rsqrt(var + BN_EPS)             # folded BN affine
        shift = beta - mean * scale

        # --- residual + relu: one fused full-width store ---------------------
        o_ref[g] = x + jnp.maximum(y * scale + shift, 0.0)
        return carry

    # fori_loop bounds vreg live ranges when Gb is large; unroll short loops.
    lax.fori_loop(0, gb, body, 0, unroll=(gb <= 8))


def pack_params(b, gamma, beta):
    """Pack the three tiny per-channel parameter vectors into one (3, C, 1) DMA."""
    return jnp.stack([b, gamma, beta], axis=0).astype(jnp.float32)


def _choose_block_problems(num_problems, bytes_per_problem,
                           target_block_bytes=4 << 20):
    """Largest divisor of num_problems with block <= ~4 MiB (v7x VMEM-safe),
    preferring >= 2 grid steps when num_problems >= 2 (v7x megacore)."""
    cap = max(1, target_block_bytes // max(bytes_per_problem, 1))
    if num_problems >= 2:
        cap = min(cap, num_problems // 2)
    cap = int(max(1, min(cap, num_problems)))
    gb = 1
    for d in range(1, cap + 1):
        if num_problems % d == 0:
            gb = d
    return gb


def residual_connection_batched(x_g, w, params):
    """x_g: (G, N, C, L) -- G independent ResidualConnection problems in one call."""
    G, N, C, L = x_g.shape
    NL = N * L

    # Lane-dense presentation: each problem becomes a (C, N*L) slab.
    x_slab = jnp.transpose(x_g, (0, 2, 1, 3)).reshape(G, C, NL).astype(jnp.float32)

    bytes_per_problem = C * NL * 4
    gb = _choose_block_problems(G, bytes_per_problem)
    grid = (G // gb,)
    block_bytes = gb * bytes_per_problem

    # Double-buffered input + output blocks (+ tiny resident params) must fit
    # scoped VMEM; clamp to 48 MiB so the limit is valid on v7x (64 MiB phys).
    vmem_limit = int(min(max(4 * block_bytes + (2 << 20), 16 << 20), 48 << 20))

    out_slab = pl.pallas_call(
        residual_connection_kernel,
        out_shape=jax.ShapeDtypeStruct((G, C, NL), jnp.float32),
        grid=grid,
        in_specs=[
            pl.BlockSpec((gb, C, NL), lambda i: (i, 0, 0)),
            pl.BlockSpec((C, C), lambda i: (0, 0)),        # same block each step -> resident
            pl.BlockSpec((3, C, 1), lambda i: (0, 0, 0)),  # same block each step -> resident
        ],
        out_specs=pl.BlockSpec((gb, C, NL), lambda i: (i, 0, 0)),
        compiler_params=pltpu.CompilerParams(
            dimension_semantics=("parallel",),             # megacore sharding on v7x
            vmem_limit_bytes=vmem_limit,
        ),
    )(x_slab, w, params)

    return jnp.transpose(out_slab.reshape(G, C, N, L), (0, 2, 1, 3))


def residual_connection(x, w, b, gamma, beta):
    """Single (N, C, L) problem -- matches the PyTorch module forward exactly."""
    out = residual_connection_batched(x[None], w, pack_params(b, gamma, beta))
    return out[0]


def reference(x, w, b, gamma, beta):
    """Pure-JAX reference (two-pass stats, unfused affine) with identical semantics."""
    y = jnp.einsum("oc,ncl->nol", w, x) + b[None, :, :]
    mean = jnp.mean(y, axis=(0, 2), keepdims=True)
    var = jnp.mean(jnp.square(y - mean), axis=(0, 2), keepdims=True)
    y_hat = (y - mean) * lax.rsqrt(var + BN_EPS)
    bn = gamma[None, :, :] * y_hat + beta[None, :, :]
    return x + jnp.maximum(bn, 0.0)


if __name__ == "__main__":
    G, N, C, L = 4, 2, 8, 128      # problems per call, batch, channels, length

    key = jax.random.PRNGKey(0)
    kx, kw, kb, kg, kbt = jax.random.split(key, 5)

    x = jax.random.normal(kx, (G, N, C, L), dtype=jnp.float32)
    w = 0.1 * jax.random.normal(kw, (C, C), dtype=jnp.float32)
    b = 0.1 * jax.random.normal(kb, (C, 1), dtype=jnp.float32)
    gamma = 1.0 + 0.1 * jax.random.normal(kg, (C, 1), dtype=jnp.float32)
    beta = 0.1 * jax.random.normal(kbt, (C, 1), dtype=jnp.float32)

    params = pack_params(b, gamma, beta)

    # Batched path: G independent problems, Gb problems per grid step (grid=(2,)).
    out = jax.block_until_ready(residual_connection_batched(x, w, params))
    ref = jax.vmap(lambda xg: reference(xg, w, b, gamma, beta))(x)
    assert out.shape == (G, N, C, L) and out.dtype == jnp.float32
    assert jnp.allclose(out, ref, atol=1e-4, rtol=1e-4), "batched kernel mismatch"

    # Different G to exercise the block-size / grid selection (G=6 -> Gb=3, grid=(2,)).
    x6 = jax.random.normal(jax.random.PRNGKey(1), (6, N, C, L), dtype=jnp.float32)
    out6 = jax.block_until_ready(residual_connection_batched(x6, w, params))
    ref6 = jax.vmap(lambda xg: reference(xg, w, b, gamma, beta))(x6)
    assert jnp.allclose(out6, ref6, atol=1e-4, rtol=1e-4), "G=6 kernel mismatch"

    # Single-problem wrapper (identical semantics to the PyTorch forward).
    out1 = jax.block_until_ready(residual_connection(x[0], w, b, gamma, beta))
    assert jnp.allclose(out1, reference(x[0], w, b, gamma, beta),
                        atol=1e-4, rtol=1e-4), "single-problem kernel mismatch"

    print("KERNEL_OK")
</pallas_src>

<mosaic_0001>
module attributes {stable_mosaic.version = 11 : i64} {
  func.func @residual_connection_kernel(%arg0: i32, %arg1: memref<2x8x256xf32, #tpu.memory_space<vmem>>, %arg2: memref<8x8xf32, #tpu.memory_space<vmem>>, %arg3: memref<3x8x1xf32, #tpu.memory_space<vmem>>, %arg4: memref<2x8x256xf32, #tpu.memory_space<vmem>>) attributes {dimension_semantics = [#tpu.dimension_semantics<parallel>], iteration_bounds = array<i64: 2>, scalar_prefetch = 0 : i64, scratch_operands = 0 : i64, tpu.core_type = #tpu.core_type<tc>, window_params = [{transform_indices = @transform_0, window_bounds = array<i64: 2, 8, 256>}, {pipeline_mode = #tpu.pipeline_mode<synchronous>, transform_indices = @transform_1, window_bounds = array<i64: 8, 8>}, {pipeline_mode = #tpu.pipeline_mode<synchronous>, transform_indices = @transform_2, window_bounds = array<i64: 3, 8, 1>}, {transform_indices = @transform_3, window_bounds = array<i64: 2, 8, 256>}]} {
    %c0 = arith.constant 0 : index
    %c0_0 = arith.constant 0 : index
    %0 = vector.load %arg2[%c0, %c0_0] : memref<8x8xf32, #tpu.memory_space<vmem>>, vector<8x8xf32>
    %c0_1 = arith.constant 0 : index
    %c0_2 = arith.constant 0 : index
    %c0_3 = arith.constant 0 : index
    %1 = vector.load %arg3[%c0_1, %c0_2, %c0_3] : memref<3x8x1xf32, #tpu.memory_space<vmem>>, vector<3x8x1xf32>
    %2 = vector.extract_strided_slice %1 {offsets = [0, 0, 0], sizes = [1, 8, 1], strides = [1, 1, 1]} : vector<3x8x1xf32> to vector<1x8x1xf32>
    %3 = vector.shape_cast %2 : vector<1x8x1xf32> to vector<8x1xf32>
    %4 = vector.extract_strided_slice %1 {offsets = [1, 0, 0], sizes = [1, 8, 1], strides = [1, 1, 1]} : vector<3x8x1xf32> to vector<1x8x1xf32>
    %5 = vector.shape_cast %4 : vector<1x8x1xf32> to vector<8x1xf32>
    %6 = vector.extract_strided_slice %1 {offsets = [2, 0, 0], sizes = [1, 8, 1], strides = [1, 1, 1]} : vector<3x8x1xf32> to vector<1x8x1xf32>
    %7 = vector.shape_cast %6 : vector<1x8x1xf32> to vector<8x1xf32>
    %c0_i32 = arith.constant 0 : i32
    %8 = arith.index_cast %c0_i32 : i32 to index
    %c0_4 = arith.constant 0 : index
    %c0_5 = arith.constant 0 : index
    %9 = vector.load %arg1[%8, %c0_4, %c0_5] : memref<2x8x256xf32, #tpu.memory_space<vmem>>, vector<1x8x256xf32>
    %10 = vector.shape_cast %9 : vector<1x8x256xf32> to vector<8x256xf32>
    %cst = arith.constant dense<0.000000e+00> : vector<8x256xf32>
    %11 = tpu.matmul %0, %10, %cst {dimension_numbers = #tpu.dot_dimension_numbers<[1], [0], [0], [1], [0, 0, 1, 1], [], []>} : vector<8x8xf32>, vector<8x256xf32>, vector<8x256xf32> -> vector<8x256xf32>
    %12 = vector.broadcast %3 : vector<8x1xf32> to vector<8x256xf32>
    %13 = arith.addf %11, %12 : vector<8x256xf32>
    %cst_6 = arith.constant dense<0.000000e+00> : vector<8xf32>
    %14 = vector.multi_reduction <add>, %13, %cst_6 [1] : vector<8x256xf32> to vector<8xf32>
    %15 = vector.shape_cast %14 : vector<8xf32> to vector<8x1xf32>
    %16 = arith.mulf %13, %13 : vector<8x256xf32>
    %cst_7 = arith.constant dense<0.000000e+00> : vector<8xf32>
    %17 = vector.multi_reduction <add>, %16, %cst_7 [1] : vector<8x256xf32> to vector<8xf32>
    %18 = vector.shape_cast %17 : vector<8xf32> to vector<8x1xf32>
    %cst_8 = arith.constant 3.906250e-03 : f32
    %19 = vector.broadcast %cst_8 : f32 to vector<8x1xf32>
    %20 = arith.mulf %15, %19 : vector<8x1xf32>
    %cst_9 = arith.constant 3.906250e-03 : f32
    %21 = vector.broadcast %cst_9 : f32 to vector<8x1xf32>
    %22 = arith.mulf %18, %21 : vector<8x1xf32>
    %23 = arith.mulf %20, %20 : vector<8x1xf32>
    %24 = arith.subf %22, %23 : vector<8x1xf32>
    %cst_10 = arith.constant 0.000000e+00 : f32
    %25 = vector.broadcast %cst_10 : f32 to vector<8x1xf32>
    %26 = arith.maximumf %24, %25 : vector<8x1xf32>
    %cst_11 = arith.constant 9.99999974E-6 : f32
    %27 = vector.broadcast %cst_11 : f32 to vector<8x1xf32>
    %28 = arith.addf %26, %27 : vector<8x1xf32>
    %29 = math.rsqrt %28 : vector<8x1xf32>
    %30 = arith.mulf %5, %29 : vector<8x1xf32>
    %31 = arith.mulf %20, %30 : vector<8x1xf32>
    %32 = arith.subf %7, %31 : vector<8x1xf32>
    %33 = vector.broadcast %30 : vector<8x1xf32> to vector<8x256xf32>
    %34 = arith.mulf %13, %33 : vector<8x256xf32>
    %35 = vector.broadcast %32 : vector<8x1xf32> to vector<8x256xf32>
    %36 = arith.addf %34, %35 : vector<8x256xf32>
    %cst_12 = arith.constant 0.000000e+00 : f32
    %37 = vector.broadcast %cst_12 : f32 to vector<8x256xf32>
    %38 = arith.maximumf %36, %37 : vector<8x256xf32>
    %39 = arith.addf %10, %38 : vector<8x256xf32>
    %40 = arith.index_cast %c0_i32 : i32 to index
    %c0_13 = arith.constant 0 : index
    %c0_14 = arith.constant 0 : index
    %41 = vector.load %arg4[%40, %c0_13, %c0_14] : memref<2x8x256xf32, #tpu.memory_space<vmem>>, vector<1x8x256xf32>
    %42 = vector.shape_cast %41 : vector<1x8x256xf32> to vector<8x256xf32>
    %43 = vector.shape_cast %39 : vector<8x256xf32> to vector<1x8x256xf32>
    tpu.vector_store %arg4[%40, %c0_13, %c0_14], %43 {strides = array<i32>} : memref<2x8x256xf32, #tpu.memory_space<vmem>>, vector<1x8x256xf32>,
    %c1_i32 = arith.constant 1 : i32
    %44 = arith.index_cast %c1_i32 : i32 to index
    %c0_15 = arith.constant 0 : index
    %c0_16 = arith.constant 0 : index
    %45 = vector.load %arg1[%44, %c0_15, %c0_16] : memref<2x8x256xf32, #tpu.memory_space<vmem>>, vector<1x8x256xf32>
    %46 = vector.shape_cast %45 : vector<1x8x256xf32> to vector<8x256xf32>
    %cst_17 = arith.constant dense<0.000000e+00> : vector<8x256xf32>
    %47 = tpu.matmul %0, %46, %cst_17 {dimension_numbers = #tpu.dot_dimension_numbers<[1], [0], [0], [1], [0, 0, 1, 1], [], []>} : vector<8x8xf32>, vector<8x256xf32>, vector<8x256xf32> -> vector<8x256xf32>
    %48 = vector.broadcast %3 : vector<8x1xf32> to vector<8x256xf32>
    %49 = arith.addf %47, %48 : vector<8x256xf32>
    %cst_18 = arith.constant dense<0.000000e+00> : vector<8xf32>
    %50 = vector.multi_reduction <add>, %49, %cst_18 [1] : vector<8x256xf32> to vector<8xf32>
    %51 = vector.shape_cast %50 : vector<8xf32> to vector<8x1xf32>
    %52 = arith.mulf %49, %49 : vector<8x256xf32>
    %cst_19 = arith.constant dense<0.000000e+00> : vector<8xf32>
    %53 = vector.multi_reduction <add>, %52, %cst_19 [1] : vector<8x256xf32> to vector<8xf32>
    %54 = vector.shape_cast %53 : vector<8xf32> to vector<8x1xf32>
    %cst_20 = arith.constant 3.906250e-03 : f32
    %55 = vector.broadcast %cst_20 : f32 to vector<8x1xf32>
    %56 = arith.mulf %51, %55 : vector<8x1xf32>
    %cst_21 = arith.constant 3.906250e-03 : f32
    %57 = vector.broadcast %cst_21 : f32 to vector<8x1xf32>
    %58 = arith.mulf %54, %57 : vector<8x1xf32>
    %59 = arith.mulf %56, %56 : vector<8x1xf32>
    %60 = arith.subf %58, %59 : vector<8x1xf32>
    %cst_22 = arith.constant 0.000000e+00 : f32
    %61 = vector.broadcast %cst_22 : f32 to vector<8x1xf32>
    %62 = arith.maximumf %60, %61 : vector<8x1xf32>
    %cst_23 = arith.constant 9.99999974E-6 : f32
    %63 = vector.broadcast %cst_23 : f32 to vector<8x1xf32>
    %64 = arith.addf %62, %63 : vector<8x1xf32>
    %65 = math.rsqrt %64 : vector<8x1xf32>
    %66 = arith.mulf %5, %65 : vector<8x1xf32>
    %67 = arith.mulf %56, %66 : vector<8x1xf32>
    %68 = arith.subf %7, %67 : vector<8x1xf32>
    %69 = vector.broadcast %66 : vector<8x1xf32> to vector<8x256xf32>
    %70 = arith.mulf %49, %69 : vector<8x256xf32>
    %71 = vector.broadcast %68 : vector<8x1xf32> to vector<8x256xf32>
    %72 = arith.addf %70, %71 : vector<8x256xf32>
    %cst_24 = arith.constant 0.000000e+00 : f32
    %73 = vector.broadcast %cst_24 : f32 to vector<8x256xf32>
    %74 = arith.maximumf %72, %73 : vector<8x256xf32>
    %75 = arith.addf %46, %74 : vector<8x256xf32>
    %76 = arith.index_cast %c1_i32 : i32 to index
    %c0_25 = arith.constant 0 : index
    %c0_26 = arith.constant 0 : index
    %77 = vector.load %arg4[%76, %c0_25, %c0_26] : memref<2x8x256xf32, #tpu.memory_space<vmem>>, vector<1x8x256xf32>
    %78 = vector.shape_cast %77 : vector<1x8x256xf32> to vector<8x256xf32>
    %79 = vector.shape_cast %75 : vector<8x256xf32> to vector<1x8x256xf32>
    tpu.vector_store %arg4[%76, %c0_25, %c0_26], %79 {strides = array<i32>} : memref<2x8x256xf32, #tpu.memory_space<vmem>>, vector<1x8x256xf32>,
    %c2_i32 = arith.constant 2 : i32
    return
  }
  func.func @transform_0(%arg0: i32) -> (i32, i32, i32) {
    %c0_i32 = arith.constant 0 : i32
    %c0_i32_0 = arith.constant 0 : i32
    %c0_i32_1 = arith.constant 0 : i32
    return %arg0, %c0_i32, %c0_i32_0 : i32, i32, i32
  }
  func.func @transform_1(%arg0: i32) -> (i32, i32) {
    %c0_i32 = arith.constant 0 : i32
    %c0_i32_0 = arith.constant 0 : i32
    %c0_i32_1 = arith.constant 0 : i32
    return %c0_i32, %c0_i32_0 : i32, i32
  }
  func.func @transform_2(%arg0: i32) -> (i32, i32, i32) {
    %c0_i32 = arith.constant 0 : i32
    %c0_i32_0 = arith.constant 0 : i32
    %c0_i32_1 = arith.constant 0 : i32
    %c0_i32_2 = arith.constant 0 : i32
    return %c0_i32, %c0_i32_0, %c0_i32_1 : i32, i32, i32
  }
  func.func @transform_3(%arg0: i32) -> (i32, i32, i32) {
    %c0_i32 = arith.constant 0 : i32
    %c0_i32_0 = arith.constant 0 : i32
    %c0_i32_1 = arith.constant 0 : i32
    return %arg0, %c0_i32, %c0_i32_0 : i32, i32, i32
  }
}

</mosaic_0001>

<llo_original>
// kernel: tpu_custom_call.1
$region0: #{tpu_custom_call.1}
  #allocation0 [shape = 'u32[]', space=smem, size = 0x4, offset = 0x4, fixed_abs, tag = 'smem constant byte address 0x4 - core index']
  #allocation1 [shape = 'u32[72,128]{1,0:T(1,128)}', space=vmem, size = 0x9000, scoped, tag = 'internal scratch']
  %s0 = inlined_call_operand.hbm [shape: f32[4,8,256], index: 0, kind: input, shape index: {}]
  %s1 = inlined_call_operand.vmem [shape: f32[8,8], index: 1, kind: input, shape index: {}]
  %s2 = inlined_call_operand.vmem [shape: f32[3,8,1], index: 2, kind: input, shape index: {}]
  %s3 = inlined_call_operand.hbm [shape: f32[4,8,256], index: 3, kind: output, shape index: {}]
  %s4 = sld [smem:[#allocation0]]
  $region49: #{tpu_custom_call.1} parent=0
    _
  %s6 = ssub.s32 1, %s4
  %s7 = scalar_select 0, %s6, %s4
  $region1: #{tpu_custom_call.1} parent=0
    #allocation2 [shape = 'u8[32768]{0}', space=vmem, size = 0x8000, scoped, tag = 'input window, operand 0']
    #allocation3 [shape = 's32[2]{0}', space=sflag, size = 0x8, scoped, tag = 'scoped memory for tpu_custom_call.1']
    #allocation4 [shape = 's32[2]{0}', space=sflag, size = 0x8, scoped, tag = 'scoped memory for tpu_custom_call.1']
    #allocation5 [shape = 'u8[32768]{0}', space=vmem, size = 0x8000, scoped, tag = 'output window, operand 0']
    %8 = vsyncpa [#allocation3], 0
    %s9 = scalar_lea.sflag [#allocation3], 1
    %10 = vsyncpa %s9, 0
    %11 = vsyncpa [#allocation4], 0
    %s12 = scalar_lea.sflag [#allocation4], 1
    %13 = vsyncpa %s12, 0
    loop: start=0, step=1, limit=4
    $region2: #{tpu_custom_call.1} parent=1 // loop_pre_header
      _
    $region3: #{tpu_custom_call.1} parent=1 // loop_header
      %s15 = sphi 0, %s19
      %p16 = scmp.ge.s32.totalorder %s15, 4
      %s25 = sphi 0, %s27
      %s28 = sphi 0, %s25
      %s29 = sphi 0, %s28
      %s45 = sphi 0, %s29
      %s49 = sphi 0, %s49
      %s51 = sphi 0, %s49
      %s52 = sphi 0, %s51
      %s66 = sphi 0, %s52
      %s70 = sphi 0, %s70
      %s72 = sphi 0, %s70
      %s73 = sphi 0, %s72
      %s87 = sphi 0, %s73
      %s93 = sphi 0, %s95
      %s96 = sphi 0, %s93
      %s97 = sphi 0, %s96
      %s113 = sphi 0, %s97
    $region4: #{tpu_custom_call.1} parent=1 // loop_header_branch
      %18 = sbr.rel (%p16) target = $region8
    $region5: #{tpu_custom_call.1} parent=1 // loop_body
      %s20 = ssub.s32 %s15, 1
      %s21 = ssub.s32 %s15, 2
      %s22 = sadd.s32 %s15, 1
      %s23 = ssub.s32 %s15, %s22
      %p24 = scmp.eq.s32.totalorder %s23, 0
      %s26 = sadd.s32 %s25, 1
      %s27 = scalar_select %p24, %s25, %s26
      %p30 = pneg %p24
      %p31 = scmp.eq.s32.totalorder %s15, 1
      %p32 = por %p30, %p31
      %p33 = scmp.ne.s32.totalorder %s25, %s28
      %p34 = scmp.eq.s32.totalorder %s15, 0
      %p35 = por %p33, %p34
      %p36 = scmp.ne.s32.totalorder %s25, %s28
      %p37 = scmp.eq.s32.totalorder %s20, 1
      %p38 = por %p36, %p37
      %p39 = scmp.ne.s32.totalorder %s28, %s29
      %p40 = scmp.eq.s32.totalorder %s20, 0
      %p41 = por %p39, %p40
      %p42 = scmp.ne.s32.totalorder %s28, %s29
      %p43 = scmp.eq.s32.totalorder %s21, 1
      %p44 = por %p42, %p43
      %p46 = scmp.ne.s32.totalorder %s29, %s45
      %p47 = scmp.eq.s32.totalorder %s21, 0
      %p48 = por %p46, %p47
      %s50 = sadd.s32 %s49, 1
      %p53 = scmp.eq.s32.totalorder %s15, 1
      %p54 = scmp.ne.s32.totalorder %s49, %s51
      %p55 = scmp.eq.s32.totalorder %s15, 0
      %p56 = por %p54, %p55
      %p57 = scmp.ne.s32.totalorder %s49, %s51
      %p58 = scmp.eq.s32.totalorder %s20, 1
      %p59 = por %p57, %p58
      %p60 = scmp.ne.s32.totalorder %s51, %s52
      %p61 = scmp.eq.s32.totalorder %s20, 0
      %p62 = por %p60, %p61
      %p63 = scmp.ne.s32.totalorder %s51, %s52
      %p64 = scmp.eq.s32.totalorder %s21, 1
      %p65 = por %p63, %p64
      %p67 = scmp.ne.s32.totalorder %s52, %s66
      %p68 = scmp.eq.s32.totalorder %s21, 0
      %p69 = por %p67, %p68
      %s71 = sadd.s32 %s70, 1
      %p74 = scmp.eq.s32.totalorder %s15, 1
      %p75 = scmp.ne.s32.totalorder %s70, %s72
      %p76 = scmp.eq.s32.totalorder %s15, 0
      %p77 = por %p75, %p76
      %p78 = scmp.ne.s32.totalorder %s70, %s72
      %p79 = scmp.eq.s32.totalorder %s20, 1
      %p80 = por %p78, %p79
      %p81 = scmp.ne.s32.totalorder %s72, %s73
      %p82 = scmp.eq.s32.totalorder %s20, 0
      %p83 = por %p81, %p82
      %p84 = scmp.ne.s32.totalorder %s72, %s73
      %p85 = scmp.eq.s32.totalorder %s21, 1
      %p86 = por %p84, %p85
      %p88 = scmp.ne.s32.totalorder %s73, %s87
      %p89 = scmp.eq.s32.totalorder %s21, 0
      %p90 = por %p88, %p89
      %s91 = ssub.s32 %s15, %s22
      %p92 = scmp.eq.s32.totalorder %s91, 0
      %s94 = sadd.s32 %s93, 1
      %s95 = scalar_select %p92, %s93, %s94
      %p98 = pneg %p92
      %p99 = scmp.eq.s32.totalorder %s15, 1
      %p100 = por %p98, %p99
      %p101 = scmp.ne.s32.totalorder %s93, %s96
      %p102 = scmp.eq.s32.totalorder %s15, 0
      %p103 = por %p101, %p102
      %p104 = scmp.ne.s32.totalorder %s93, %s96
      %p105 = scmp.eq.s32.totalorder %s20, 1
      %p106 = por %p104, %p105
      %p107 = scmp.ne.s32.totalorder %s96, %s97
      %p108 = scmp.eq.s32.totalorder %s20, 0
      %p109 = por %p107, %p108
      %p110 = scmp.ne.s32.totalorder %s96, %s97
      %p111 = scmp.eq.s32.totalorder %s21, 1
      %p112 = por %p110, %p111
      %p114 = scmp.ne.s32.totalorder %s97, %s113
      %p115 = scmp.eq.s32.totalorder %s21, 0
      %p116 = por %p114, %p115
      %p117 = scmp.le.s32.totalorder 1, %s15
      %p118 = scmp.lt.s32.totalorder %s15, 3
      %p119 = pnand %p117, %p118
      %p120 = pneg %p119
      // Predicated region
      $region9: #{tpu_custom_call.1} parent=5 // pred_check
        _
      $region10: #{tpu_custom_call.1} parent=5 // pred_check_branch
        %122 = sbr.rel (%p119) target = $region12
      $region11: #{tpu_custom_call.1} parent=5 // pred_region
        %s123 = ssub.s32 %s15, 1
        // Predicated region
        $region13: #{tpu_custom_call.1} parent=11 // pred_check
          %p124 = pneg %p62
        $region14: #{tpu_custom_call.1} parent=11 // pred_check_branch
          %126 = sbr.rel (%p124) target = $region16
        $region15: #{tpu_custom_call.1} parent=11 // pred_region
          _
        $region16: #{tpu_custom_call.1} parent=11 // pred_fallthru
          _
        // Predicated region
        $region17: #{tpu_custom_call.1} parent=11 // pred_check
          %p127 = pneg %p83
        $region18: #{tpu_custom_call.1} parent=11 // pred_check_branch
          %129 = sbr.rel (%p127) target = $region20
        $region19: #{tpu_custom_call.1} parent=11 // pred_region
          _
        $region20: #{tpu_custom_call.1} parent=11 // pred_fallthru
          _
      $region12: #{tpu_custom_call.1} parent=5 // pred_fallthru
        _
      %p130 = scmp.lt.s32.totalorder %s15, 2
      // Predicated region
      $region21: #{tpu_custom_call.1} parent=5 // pred_check
        %p131 = pneg %p130
      $region22: #{tpu_custom_call.1} parent=5 // pred_check_branch
        %133 = sbr.rel (%p131) target = $region24
      $region23: #{tpu_custom_call.1} parent=5 // pred_region
        // Predicated region
        $region25: #{tpu_custom_call.1} parent=23 // pred_check
          %p134 = pneg %p35
        $region26: #{tpu_custom_call.1} parent=23 // pred_check_branch
          %136 = sbr.rel (%p134) target = $region28
        $region27: #{tpu_custom_call.1} parent=23 // pred_region
          %s137 = sand.u32 %s25, 1
          %s138 = scalar_lea.sflag [#allocation3], %s137
          %s139 = sand.u32 %s25, 1
          %s140 = smul.addr %s139, 32
          %s141 = scalar_lea.vmem [#allocation2], %s140
          %s142 = smul.u32 2, %s15
          %144 = vsyncadd %s138, 0
          %s145 = smul.addr %s142, 2
          %s146 = smul.addr %s145, 8
          %s147 = scalar_lea.hbm %s0, %s146
          %s148 = sshll.u32 %s147, 4
          %s149 = int_to_ptr.hbm [resolvable:$true] %s148
          %s150 = sshll.u32 %s141, 4
          %s151 = int_to_ptr.vmem [resolvable:$true] %s150
          %156 = dma.hbm_to_vmem [thread:$0]  %s149, 512, %s151, %s138, 256, 256, 16
        $region28: #{tpu_custom_call.1} parent=23 // pred_fallthru
          _
      $region24: #{tpu_custom_call.1} parent=5 // pred_fallthru
        _
      %p157 = scmp.le.s32.totalorder 1, %s15
      %p158 = scmp.lt.s32.totalorder %s15, 3
      %p159 = pnand %p157, %p158
      %p160 = pneg %p159
      // Predicated region
      $region29: #{tpu_custom_call.1} parent=5 // pred_check
        _
      $region30: #{tpu_custom_call.1} parent=5 // pred_check_branch
        %162 = sbr.rel (%p159) target = $region32
      $region31: #{tpu_custom_call.1} parent=5 // pred_region
        %s163 = ssub.s32 %s15, 1
        %s164 = sand.u32 %s28, 1
        %s165 = scalar_lea.sflag [#allocation3], %s164
        %s166 = sand.u32 %s28, 1
        %s167 = smul.addr %s166, 32
        %s168 = scalar_lea.vmem [#allocation2], %s167
        // Predicated region
        $region33: #{tpu_custom_call.1} parent=31 // pred_check
          %p169 = pneg %p41
        $region34: #{tpu_custom_call.1} parent=31 // pred_check_branch
          %171 = sbr.rel (%p169) target = $region36
        $region35: #{tpu_custom_call.1} parent=31 // pred_region
          %173 = dma.done %s165, 512
        $region36: #{tpu_custom_call.1} parent=31 // pred_fallthru
          _
        %s174 = sand.u32 %s28, 1
        %s175 = scalar_lea.sflag [#allocation3], %s174
        %s176 = sand.u32 %s28, 1
        %s177 = smul.addr %s176, 32
        %s178 = scalar_lea.vmem [#allocation2], %s177
        %p179 = pneg %p41
        %p180 = pneg %p38
        %p181 = pneg %p62
        %p182 = pneg %p59
        %p183 = pneg %p83
        %p184 = pneg %p80
        %p185 = pneg %p109
        %p186 = pneg %p106
        %s187 = sand.u32 %s96, 1
        %s188 = scalar_lea.sflag [#allocation4], %s187
        %s189 = sand.u32 %s96, 1
        %s190 = smul.addr %s189, 32
        %s191 = scalar_lea.vmem [#allocation5], %s190
        %s192 = smul.u32 2, %s20
        %s193 = smul.u32 2, %s20
        %v194 = vld [vmem:[%s1] sm:$0xff]
        %v195 = vld [vmem:[%s2] sm:$0xff]
        %v196 = vld [vmem:[%s2 + $0x8] sm:$0xff]
        %v197 = vld [vmem:[%s2 + $0x10] sm:$0xff]
        %v198 = vld [vmem:[%s168] sm:$0xff]
        %v199 = vld [vmem:[%s168 + $0x8] sm:$0xff]
        %201 = vset.pattern.permute.xlu0 0
        %202 = vperm.xlu0 %201, %v195
        %v203 = vpop.permute.xlu0 %202
        %vm205 = vcmask 64512
        %v207 = vsel %vm205, %v194, 0
        %209 = vmatpush.msra.mxu0 0.0
        %210 = vmatpush.msra.mxu0 0.0
        %211 = vmatpush.msra.mxu0 0.0
        %212 = vmatpush.msra.mxu0 0.0
        %213 = vmatpush.msra.mxu0 0.0
        %214 = vmatpush.msra.mxu0 0.0
        %215 = vmatpush.msra.mxu0 0.0
        %216 = vmatpush.msra.mxu0 0.0
        %217 = vmatpush.msra.mxu0 0.0
        %218 = vmatpush.msra.mxu0 0.0
        %219 = vmatpush.msra.mxu0 0.0
        %220 = vmatpush.msra.mxu0 0.0
        %221 = vmatpush.msra.mxu0 0.0
        %222 = vmatpush.msra.mxu0 0.0
        %223 = vmatpush.msra.mxu0 0.0
        %224 = vmatpush.msra.mxu0 %v198
        %225 = vmatmul.f32.gmra.mxu0 %v207
        %v226 = vpop.f32.mrf.mxu0
        %v227 = vadd.f32 %v203, %v226
        %228 = vdwg.mxu0
        %229 = vmatpush.msra.mxu0 0.0
        %230 = vmatpush.msra.mxu0 0.0
        %231 = vmatpush.msra.mxu0 0.0
        %232 = vmatpush.msra.mxu0 0.0
        %233 = vmatpush.msra.mxu0 0.0
        %234 = vmatpush.msra.mxu0 0.0
        %235 = vmatpush.msra.mxu0 0.0
        %236 = vmatpush.msra.mxu0 0.0
        %237 = vmatpush.msra.mxu0 0.0
        %238 = vmatpush.msra.mxu0 0.0
        %239 = vmatpush.msra.mxu0 0.0
        %240 = vmatpush.msra.mxu0 0.0
        %241 = vmatpush.msra.mxu0 0.0
        %242 = vmatpush.msra.mxu0 0.0
        %243 = vmatpush.msra.mxu0 0.0
        %244 = vmatpush.msra.mxu0 %v199
        %245 = vmatmul.f32.gmra.mxu0 %v207
        %v246 = vpop.f32.mrf.mxu0
        %v247 = vadd.f32 %v203, %v246
        %248 = vdwg.mxu0
        %v249 = vadd.f32 %v227, %v247
        %250 = vadd.xlane.f32.xlu0 %v249
        %v251 = vpop.xlane.xlu0 %250
        %v252 = vmul.f32 %v227, %v227
        %v253 = vmul.f32 %v247, %v247
        %v254 = vadd.f32 %v252, %v253
        %255 = vadd.xlane.f32.xlu0 %v254
        %v256 = vpop.xlane.xlu0 %255
        %v257 = vmul.f32 %v251, 0.00390625
        %v258 = vmul.f32 %v256, 0.00390625
        %v259 = vmul.f32 %v257, %v257
        %v260 = vsub.f32 %v258, %v259
        %v261 = vmax.f32 %v260, 0.0
        %v262 = vadd.f32 %v261, 1e-05
        %v263 = vrsqrt.pop %v262
        %v264 = vmul.f32 %v263, %v262
        %v265 = vmul.f32 %v264, %v263
        %v266 = vmul.f32 0.5, %v265
        %v267 = vsub.f32 1.5, %v266
        %v268 = vmul.f32 %v263, %v267
        %vm269 = vweird.f32 %v262
        %vm270 = vweird.f32 %v263
        %vm271 = vmor %vm269, %vm270
        %v272 = vsel %vm271, %v263, %v268
        %v273 = vmul.f32 %v196, %v272
        %v274 = vmul.f32 %v257, %v273
        %v275 = vsub.f32 %v197, %v274
        %277 = vset.pattern.permute.xlu0 0
        %278 = vperm.xlu0 %277, %v273
        %v279 = vpop.permute.xlu0 %278
        %v281 = vmul.f32 %v227, %v279
        %v282 = vmul.f32 %v247, %v279
        %284 = vset.pattern.permute.xlu0 0
        %285 = vperm.xlu0 %284, %v275
        %v286 = vpop.permute.xlu0 %285
        %v288 = vadd.f32 %v281, %v286
        %v289 = vadd.f32 %v282, %v286
        %v290 = vmax.f32 %v288, 0.0
        %v291 = vmax.f32 %v289, 0.0
        %v292 = vadd.f32 %v198, %v290
        %v293 = vadd.f32 %v199, %v291
        %294 = vst [vmem:[%s191] sm:$0xff] %v292
        %295 = vst [vmem:[%s191 + $0x8] sm:$0xff] %v293
        %s296 = scalar_lea.vmem %s168, 16 [#allocation2]
        %v297 = vld [vmem:[%s296] sm:$0xff]
        %v298 = vld [vmem:[%s296 + $0x8] sm:$0xff]
        %299 = vmatpush.msra.mxu0 0.0
        %300 = vmatpush.msra.mxu0 0.0
        %301 = vmatpush.msra.mxu0 0.0
        %302 = vmatpush.msra.mxu0 0.0
        %303 = vmatpush.msra.mxu0 0.0
        %304 = vmatpush.msra.mxu0 0.0
        %305 = vmatpush.msra.mxu0 0.0
        %306 = vmatpush.msra.mxu0 0.0
        %307 = vmatpush.msra.mxu0 0.0
        %308 = vmatpush.msra.mxu0 0.0
        %309 = vmatpush.msra.mxu0 0.0
        %310 = vmatpush.msra.mxu0 0.0
        %311 = vmatpush.msra.mxu0 0.0
        %312 = vmatpush.msra.mxu0 0.0
        %313 = vmatpush.msra.mxu0 0.0
        %314 = vmatpush.msra.mxu0 %v297
        %315 = vmatmul.f32.gmra.mxu0 %v207
        %v316 = vpop.f32.mrf.mxu0
        %v317 = vadd.f32 %v203, %v316
        %318 = vdwg.mxu0
        %319 = vmatpush.msra.mxu0 0.0
        %320 = vmatpush.msra.mxu0 0.0
        %321 = vmatpush.msra.mxu0 0.0
        %322 = vmatpush.msra.mxu0 0.0
        %323 = vmatpush.msra.mxu0 0.0
        %324 = vmatpush.msra.mxu0 0.0
        %325 = vmatpush.msra.mxu0 0.0
        %326 = vmatpush.msra.mxu0 0.0
        %327 = vmatpush.msra.mxu0 0.0
        %328 = vmatpush.msra.mxu0 0.0
        %329 = vmatpush.msra.mxu0 0.0
        %330 = vmatpush.msra.mxu0 0.0
        %331 = vmatpush.msra.mxu0 0.0
        %332 = vmatpush.msra.mxu0 0.0
        %333 = vmatpush.msra.mxu0 0.0
        %334 = vmatpush.msra.mxu0 %v298
        %335 = vmatmul.f32.gmra.mxu0 %v207
        %v336 = vpop.f32.mrf.mxu0
        %v337 = vadd.f32 %v203, %v336
        %338 = vdwg.mxu0
        %v339 = vadd.f32 %v317, %v337
        %340 = vadd.xlane.f32.xlu0 %v339
        %v341 = vpop.xlane.xlu0 %340
        %v342 = vmul.f32 %v317, %v317
        %v343 = vmul.f32 %v337, %v337
        %v344 = vadd.f32 %v342, %v343
        %345 = vadd.xlane.f32.xlu0 %v344
        %v346 = vpop.xlane.xlu0 %345
        %v347 = vmul.f32 %v341, 0.00390625
        %v348 = vmul.f32 %v346, 0.00390625
        %v349 = vmul.f32 %v347, %v347
        %v350 = vsub.f32 %v348, %v349
        %v351 = vmax.f32 %v350, 0.0
        %v352 = vadd.f32 %v351, 1e-05
        %v353 = vrsqrt.pop %v352
        %v354 = vmul.f32 %v353, %v352
        %v355 = vmul.f32 %v354, %v353
        %v356 = vmul.f32 0.5, %v355
        %v357 = vsub.f32 1.5, %v356
        %v358 = vmul.f32 %v353, %v357
        %vm359 = vweird.f32 %v352
        %vm360 = vweird.f32 %v353
        %vm361 = vmor %vm359, %vm360
        %v362 = vsel %vm361, %v353, %v358
        %v363 = vmul.f32 %v196, %v362
        %v364 = vmul.f32 %v347, %v363
        %v365 = vsub.f32 %v197, %v364
        %367 = vset.pattern.permute.xlu0 0
        %368 = vperm.xlu0 %367, %v363
        %v369 = vpop.permute.xlu0 %368
        %v371 = vmul.f32 %v317, %v369
        %v372 = vmul.f32 %v337, %v369
        %374 = vset.pattern.permute.xlu0 0
        %375 = vperm.xlu0 %374, %v365
        %v376 = vpop.permute.xlu0 %375
        %v378 = vadd.f32 %v371, %v376
        %v379 = vadd.f32 %v372, %v376
        %v380 = vmax.f32 %v378, 0.0
        %v381 = vmax.f32 %v379, 0.0
        %v382 = vadd.f32 %v297, %v380
        %v383 = vadd.f32 %v298, %v381
        %s384 = scalar_lea.vmem %s191, 16 [#allocation5]
        %385 = vst [vmem:[%s384] sm:$0xff] %v382
        %386 = vst [vmem:[%s384 + $0x8] sm:$0xff] %v383
        %s387 = sand.u32 %s96, 1
        %s388 = scalar_lea.sflag [#allocation4], %s387
        %s389 = sand.u32 %s96, 1
        %s390 = smul.addr %s389, 32
        %s391 = scalar_lea.vmem [#allocation5], %s390
        // Predicated region
        $region37: #{tpu_custom_call.1} parent=31 // pred_check
          %p392 = pneg %p106
        $region38: #{tpu_custom_call.1} parent=31 // pred_check_branch
          %394 = sbr.rel (%p392) target = $region40
        $region39: #{tpu_custom_call.1} parent=31 // pred_region
          %s395 = smul.u32 2, %s20
          %397 = vsyncadd %s388, 0
          %s398 = smul.addr %s395, 2
          %s399 = smul.addr %s398, 8
          %s400 = scalar_lea.hbm %s3, %s399
          %s401 = sshll.u32 %s391, 4
          %s402 = int_to_ptr.vmem [resolvable:$true] %s401
          %s403 = sshll.u32 %s400, 4
          %s404 = int_to_ptr.hbm [resolvable:$true] %s403
          %409 = dma.vmem_to_hbm [thread:$0]  %s402, 512, %s404, %s388, 256, 256, 16
        $region40: #{tpu_custom_call.1} parent=31 // pred_fallthru
          _
      $region32: #{tpu_custom_call.1} parent=5 // pred_fallthru
        _
      %p410 = scmp.le.s32.totalorder 2, %s15
      // Predicated region
      $region41: #{tpu_custom_call.1} parent=5 // pred_check
        %p411 = pneg %p410
      $region42: #{tpu_custom_call.1} parent=5 // pred_check_branch
        %413 = sbr.rel (%p411) target = $region44
      $region43: #{tpu_custom_call.1} parent=5 // pred_region
        %s414 = ssub.s32 %s15, 2
        // Predicated region
        $region45: #{tpu_custom_call.1} parent=43 // pred_check
          %p415 = pneg %p112
        $region46: #{tpu_custom_call.1} parent=43 // pred_check_branch
          %417 = sbr.rel (%p415) target = $region48
        $region47: #{tpu_custom_call.1} parent=43 // pred_region
          %s418 = sand.u32 %s97, 1
          %s419 = scalar_lea.sflag [#allocation4], %s418
          %s420 = sand.u32 %s97, 1
          %s421 = smul.addr %s420, 32
          %s422 = scalar_lea.vmem [#allocation5], %s421
          %424 = dma.done %s419, 512
        $region48: #{tpu_custom_call.1} parent=43 // pred_fallthru
          _
      $region44: #{tpu_custom_call.1} parent=5 // pred_fallthru
        _
    $region6: #{tpu_custom_call.1} parent=1 // loop_footer
      %s19 = sadd.s32 1, %s15
    $region7: #{tpu_custom_call.1} parent=1 // loop_footer_branch
      %14 = sbr.rel target = $region3
    $region8: #{tpu_custom_call.1} parent=1 // loop_exit
      _
    %425 = vsyncpa [#allocation3], 1
    %s426 = scalar_lea.sflag [#allocation3], 1
    %427 = vsyncpa %s426, 1
    %428 = vsyncpa [#allocation4], 1
    %s429 = scalar_lea.sflag [#allocation4], 1
    %430 = vsyncpa %s429, 1

</llo_original>
